<compile_context>
chip_gen: v7x
topology: tpu7x:2x2x1
jax: 0.10.0
libtpu: 0.0.40
codegen_flags: <defaults>
</compile_context>

<pallas_src>
import math

import jax
import jax.numpy as jnp
from jax.experimental import pallas as pl
from jax.experimental.pallas import tpu as pltpu

# ---------------- model sizes (small, consistent with the module) ----------------
TIME_STEP = 10      # self.T
HIDDEN = 32         # hidden_size
CODE_HIDDEN = 32    # code_hidden_size (must equal HIDDEN for the module's shapes to work)
VECTOR = 8          # vector_size (LSTM input_size)
BATCH = 8           # 8 rows -> sublane-aligned per-step slices


def _dot(a, b):
    return jnp.dot(a, b, preferred_element_type=jnp.float32)


def attn_decoder_kernel(h_ref, y_ref, wih_ref, whh_ref, bl_ref,
                        wf1d_ref, wf1h_ref, bf1_ref, wf2_ref, bf2_ref,
                        out_ref):
    """h_ref: (T*B, C) time-major-flattened, y_ref: (T*B, V), out_ref: (B, 1).

    Weights are pre-transposed to (in, out); bl_ref = bih + bhh; wf1 pre-split into the
    rows multiplying d (wf1d) and the rows multiplying h_last (wf1h).
    """
    TB, C = h_ref.shape
    B = out_ref.shape[0]
    H = wf1d_ref.shape[0]
    T = TB // B

    # ---- hoisted LSTM gate matmuls for all time steps at once ----
    # (attention weights are identically 1.0 -> the LSTM hidden input each step is h_t,
    #  which is independent of the recurrence, so the matmuls can leave the loop)
    gates = (_dot(y_ref[...], wih_ref[...])
             + _dot(h_ref[...], whh_ref[...])
             + bl_ref[...])                               # (T*B, 4H), gate order i,f,g,o

    # full-width activation passes, then lane slices of the activated results
    sig = jax.nn.sigmoid(gates)
    tnh = jnp.tanh(gates)
    i_all = sig[:, 0 * H:1 * H]
    f_all = sig[:, 1 * H:2 * H]
    g_all = tnh[:, 2 * H:3 * H]
    o_all = sig[:, 3 * H:4 * H]
    ig_all = i_all * g_all                                # (T*B, H)

    # ---- element-wise cell-state recurrence (only the cell state carries across time) ----
    s = jnp.zeros((B, H), jnp.float32)
    for t in range(T):                                    # static trip count, unrolled
        lo = t * B                                        # sublane-aligned (B == 8)
        s = f_all[lo:lo + B, :] * s + ig_all[lo:lo + B, :]

    # final decoder hidden state (the only d the head ever sees)
    d = o_all[(T - 1) * B:, :] * jnp.tanh(s)              # (B, H)

    # ---- head: fc2(fc1(cat(d, h_[-1]))) as split-weight sums (no concat) ----
    h_last = h_ref[(T - 1) * B:, :]                       # (B, C)
    hid = (_dot(d, wf1d_ref[...]) + _dot(h_last, wf1h_ref[...]) + bf1_ref[...])   # (B, H)
    out_ref[...] = _dot(hid, wf2_ref[...]) + bf2_ref[...]                         # (B, 1)


def attn_decoder_forward(h, y_seq, params):
    """h: (B, T, C), y_seq: (B, T, V)."""
    B = h.shape[0]
    if y_seq.shape[0] != B:            # mirrors `y_seq = y_seq[:batch_size, :]`
        y_seq = y_seq[:B]
    T, C = h.shape[1], h.shape[2]
    V = y_seq.shape[2]
    H = params["whh"].shape[0]

    # time-major flatten: (B, T, ·) -> (T, B, ·) -> (T*B, ·)   (layout plumbing, outside kernel)
    h_flat = jnp.transpose(h, (1, 0, 2)).reshape(T * B, C)
    y_flat = jnp.transpose(y_seq, (1, 0, 2)).reshape(T * B, V)

    # wrapper-side (zero runtime cost) weight preprocessing
    b_lstm = params["bih"] + params["bhh"]                # (1, 4H)
    wf1_d = params["wf1"][:H, :]                          # rows multiplying d
    wf1_h = params["wf1"][H:, :]                          # rows multiplying h_last
    # attn1/attn2/attn3 params are intentionally NOT passed: softmax over a size-1 axis
    # makes the whole attention branch a constant 1.0 multiplier.

    flat = [h_flat, y_flat, params["wih"], params["whh"], b_lstm,
            wf1_d, wf1_h, params["bf1"], params["wf2"], params["bf2"]]
    return pl.pallas_call(
        attn_decoder_kernel,
        out_shape=jax.ShapeDtypeStruct((B, 1), jnp.float32),
        in_specs=[pl.BlockSpec(memory_space=pltpu.MemorySpace.VMEM)] * len(flat),
        out_specs=pl.BlockSpec(memory_space=pltpu.MemorySpace.VMEM),
    )(*flat)


# ---------------- pure-JAX reference (faithful per-step math, incl. attention) ----------------
def reference_forward(h, y_seq, p):
    B = h.shape[0]
    if y_seq.shape[0] != B:
        y_seq = y_seq[:B]
    h_ = jnp.transpose(h, (1, 0, 2))         # (T, B, C)
    y_ = jnp.transpose(y_seq, (1, 0, 2))     # (T, B, V)
    T = h_.shape[0]
    H = p["whh"].shape[0]
    d = jnp.zeros((B, H), jnp.float32)
    s = jnp.zeros((B, H), jnp.float32)
    for t in range(T):
        h_t = h_[t]
        x = jnp.concatenate([d, h_t], axis=1)
        a = jnp.tanh((x @ p["w1"] + p["b1"]) @ p["w2"] + p["b2"])
        aw = a @ p["w3"] + p["b3"]                                  # (B, 1)
        # F.softmax over the unsqueezed size-1 leading axis (faithful to PyTorch)
        attn = jax.nn.softmax(aw[None, :, :], axis=0)[0]
        h1 = attn * h_t
        gates = y_[t] @ p["wih"] + p["bih"] + h1 @ p["whh"] + p["bhh"]
        i_g = jax.nn.sigmoid(gates[:, 0 * H:1 * H])
        f_g = jax.nn.sigmoid(gates[:, 1 * H:2 * H])
        g_g = jnp.tanh(gates[:, 2 * H:3 * H])
        o_g = jax.nn.sigmoid(gates[:, 3 * H:4 * H])
        s = f_g * s + i_g * g_g
        d = o_g * jnp.tanh(s)
    z = jnp.concatenate([d, h_[-1]], axis=1)
    return (z @ p["wf1"] + p["bf1"]) @ p["wf2"] + p["bf2"]


def init_params(key):
    """Deterministic synthetic parameters; weights stored (in, out), biases (1, out)."""
    ks = jax.random.split(key, 10)

    def linear(k, fan_in, fan_out):
        bound = 1.0 / math.sqrt(fan_in)
        kw, kb = jax.random.split(k)
        w = jax.random.uniform(kw, (fan_in, fan_out), jnp.float32, -bound, bound)
        b = jax.random.uniform(kb, (1, fan_out), jnp.float32, -bound, bound)
        return w, b

    p = {}
    p["w1"], p["b1"] = linear(ks[0], 2 * HIDDEN, CODE_HIDDEN)          # attn1
    p["w2"], p["b2"] = linear(ks[1], CODE_HIDDEN, CODE_HIDDEN)         # attn2
    p["w3"], p["b3"] = linear(ks[2], CODE_HIDDEN, 1)                   # attn3
    bound = 1.0 / math.sqrt(HIDDEN)                                    # LSTM (gate order i,f,g,o)
    k0, k1, k2, k3 = jax.random.split(ks[3], 4)
    p["wih"] = jax.random.uniform(k0, (VECTOR, 4 * HIDDEN), jnp.float32, -bound, bound)
    p["whh"] = jax.random.uniform(k1, (HIDDEN, 4 * HIDDEN), jnp.float32, -bound, bound)
    p["bih"] = jax.random.uniform(k2, (1, 4 * HIDDEN), jnp.float32, -bound, bound)
    p["bhh"] = jax.random.uniform(k3, (1, 4 * HIDDEN), jnp.float32, -bound, bound)
    p["wf1"], p["bf1"] = linear(ks[4], HIDDEN + CODE_HIDDEN, HIDDEN)   # fc1 (rows: [d ; h_last])
    p["wf2"], p["bf2"] = linear(ks[5], HIDDEN, 1)                      # fc2
    # TODO(synk): self.tilde is never used in forward(), so it is intentionally not created.
    return p


if __name__ == "__main__":
    key = jax.random.PRNGKey(0)
    k_h, k_y, k_p = jax.random.split(key, 3)

    h = jax.random.normal(k_h, (BATCH, TIME_STEP, CODE_HIDDEN), jnp.float32)
    y_seq = jax.random.normal(k_y, (BATCH, TIME_STEP, VECTOR), jnp.float32)
    params = init_params(k_p)

    out = attn_decoder_forward(h, y_seq, params)
    out = jax.block_until_ready(out)

    ref = reference_forward(h, y_seq, params)
    assert out.shape == (BATCH, 1)
    assert jnp.allclose(out, ref, rtol=1e-3, atol=1e-3), (out, ref)

    print("KERNEL_OK")
</pallas_src>

<mosaic_0001>
module attributes {stable_mosaic.version = 11 : i64} {
  func.func @attn_decoder_kernel(%arg0: memref<80x32xf32, #tpu.memory_space<vmem>>, %arg1: memref<80x8xf32, #tpu.memory_space<vmem>>, %arg2: memref<8x128xf32, #tpu.memory_space<vmem>>, %arg3: memref<32x128xf32, #tpu.memory_space<vmem>>, %arg4: memref<1x128xf32, #tpu.memory_space<vmem>>, %arg5: memref<32x32xf32, #tpu.memory_space<vmem>>, %arg6: memref<32x32xf32, #tpu.memory_space<vmem>>, %arg7: memref<1x32xf32, #tpu.memory_space<vmem>>, %arg8: memref<32x1xf32, #tpu.memory_space<vmem>>, %arg9: memref<1x1xf32, #tpu.memory_space<vmem>>, %arg10: memref<8x1xf32, #tpu.memory_space<vmem>>) attributes {dimension_semantics = [], scalar_prefetch = 0 : i64, scratch_operands = 0 : i64, tpu.core_type = #tpu.core_type<tc>} {
    %c0 = arith.constant 0 : index
    %c0_0 = arith.constant 0 : index
    %0 = vector.load %arg1[%c0, %c0_0] : memref<80x8xf32, #tpu.memory_space<vmem>>, vector<80x8xf32>
    %c0_1 = arith.constant 0 : index
    %c0_2 = arith.constant 0 : index
    %1 = vector.load %arg2[%c0_1, %c0_2] : memref<8x128xf32, #tpu.memory_space<vmem>>, vector<8x128xf32>
    %cst = arith.constant dense<0.000000e+00> : vector<80x128xf32>
    %2 = tpu.matmul %0, %1, %cst {dimension_numbers = #tpu.dot_dimension_numbers<[1], [0], [0], [1], [0, 0, 1, 1], [], []>} : vector<80x8xf32>, vector<8x128xf32>, vector<80x128xf32> -> vector<80x128xf32>
    %c0_3 = arith.constant 0 : index
    %c0_4 = arith.constant 0 : index
    %3 = vector.load %arg0[%c0_3, %c0_4] : memref<80x32xf32, #tpu.memory_space<vmem>>, vector<80x32xf32>
    %c0_5 = arith.constant 0 : index
    %c0_6 = arith.constant 0 : index
    %4 = vector.load %arg3[%c0_5, %c0_6] : memref<32x128xf32, #tpu.memory_space<vmem>>, vector<32x128xf32>
    %cst_7 = arith.constant dense<0.000000e+00> : vector<80x128xf32>
    %5 = tpu.matmul %3, %4, %cst_7 {dimension_numbers = #tpu.dot_dimension_numbers<[1], [0], [0], [1], [0, 0, 1, 1], [], []>} : vector<80x32xf32>, vector<32x128xf32>, vector<80x128xf32> -> vector<80x128xf32>
    %6 = arith.addf %2, %5 : vector<80x128xf32>
    %c0_8 = arith.constant 0 : index
    %c0_9 = arith.constant 0 : index
    %7 = vector.load %arg4[%c0_8, %c0_9] : memref<1x128xf32, #tpu.memory_space<vmem>>, vector<1x128xf32>
    %8 = vector.broadcast %7 : vector<1x128xf32> to vector<80x128xf32>
    %9 = arith.addf %6, %8 : vector<80x128xf32>
    %10 = arith.negf %9 : vector<80x128xf32>
    %11 = math.exp %10 : vector<80x128xf32>
    %cst_10 = arith.constant 1.000000e+00 : f32
    %12 = vector.broadcast %cst_10 : f32 to vector<80x128xf32>
    %13 = arith.addf %12, %11 : vector<80x128xf32>
    %14 = arith.divf %12, %13 : vector<80x128xf32>
    %15 = math.tanh %9 : vector<80x128xf32>
    %16 = vector.extract_strided_slice %14 {offsets = [0, 0], sizes = [80, 32], strides = [1, 1]} : vector<80x128xf32> to vector<80x32xf32>
    %17 = vector.extract_strided_slice %14 {offsets = [0, 32], sizes = [80, 32], strides = [1, 1]} : vector<80x128xf32> to vector<80x32xf32>
    %18 = vector.extract_strided_slice %15 {offsets = [0, 64], sizes = [80, 32], strides = [1, 1]} : vector<80x128xf32> to vector<80x32xf32>
    %19 = vector.extract_strided_slice %14 {offsets = [0, 96], sizes = [80, 32], strides = [1, 1]} : vector<80x128xf32> to vector<80x32xf32>
    %20 = arith.mulf %16, %18 : vector<80x32xf32>
    %cst_11 = arith.constant 0.000000e+00 : f32
    %21 = vector.broadcast %cst_11 : f32 to vector<8x32xf32>
    %22 = vector.extract_strided_slice %17 {offsets = [0, 0], sizes = [8, 32], strides = [1, 1]} : vector<80x32xf32> to vector<8x32xf32>
    %23 = arith.mulf %22, %21 : vector<8x32xf32>
    %24 = vector.extract_strided_slice %20 {offsets = [0, 0], sizes = [8, 32], strides = [1, 1]} : vector<80x32xf32> to vector<8x32xf32>
    %25 = arith.addf %23, %24 : vector<8x32xf32>
    %26 = vector.extract_strided_slice %17 {offsets = [8, 0], sizes = [8, 32], strides = [1, 1]} : vector<80x32xf32> to vector<8x32xf32>
    %27 = arith.mulf %26, %25 : vector<8x32xf32>
    %28 = vector.extract_strided_slice %20 {offsets = [8, 0], sizes = [8, 32], strides = [1, 1]} : vector<80x32xf32> to vector<8x32xf32>
    %29 = arith.addf %27, %28 : vector<8x32xf32>
    %30 = vector.extract_strided_slice %17 {offsets = [16, 0], sizes = [8, 32], strides = [1, 1]} : vector<80x32xf32> to vector<8x32xf32>
    %31 = arith.mulf %30, %29 : vector<8x32xf32>
    %32 = vector.extract_strided_slice %20 {offsets = [16, 0], sizes = [8, 32], strides = [1, 1]} : vector<80x32xf32> to vector<8x32xf32>
    %33 = arith.addf %31, %32 : vector<8x32xf32>
    %34 = vector.extract_strided_slice %17 {offsets = [24, 0], sizes = [8, 32], strides = [1, 1]} : vector<80x32xf32> to vector<8x32xf32>
    %35 = arith.mulf %34, %33 : vector<8x32xf32>
    %36 = vector.extract_strided_slice %20 {offsets = [24, 0], sizes = [8, 32], strides = [1, 1]} : vector<80x32xf32> to vector<8x32xf32>
    %37 = arith.addf %35, %36 : vector<8x32xf32>
    %38 = vector.extract_strided_slice %17 {offsets = [32, 0], sizes = [8, 32], strides = [1, 1]} : vector<80x32xf32> to vector<8x32xf32>
    %39 = arith.mulf %38, %37 : vector<8x32xf32>
    %40 = vector.extract_strided_slice %20 {offsets = [32, 0], sizes = [8, 32], strides = [1, 1]} : vector<80x32xf32> to vector<8x32xf32>
    %41 = arith.addf %39, %40 : vector<8x32xf32>
    %42 = vector.extract_strided_slice %17 {offsets = [40, 0], sizes = [8, 32], strides = [1, 1]} : vector<80x32xf32> to vector<8x32xf32>
    %43 = arith.mulf %42, %41 : vector<8x32xf32>
    %44 = vector.extract_strided_slice %20 {offsets = [40, 0], sizes = [8, 32], strides = [1, 1]} : vector<80x32xf32> to vector<8x32xf32>
    %45 = arith.addf %43, %44 : vector<8x32xf32>
    %46 = vector.extract_strided_slice %17 {offsets = [48, 0], sizes = [8, 32], strides = [1, 1]} : vector<80x32xf32> to vector<8x32xf32>
    %47 = arith.mulf %46, %45 : vector<8x32xf32>
    %48 = vector.extract_strided_slice %20 {offsets = [48, 0], sizes = [8, 32], strides = [1, 1]} : vector<80x32xf32> to vector<8x32xf32>
    %49 = arith.addf %47, %48 : vector<8x32xf32>
    %50 = vector.extract_strided_slice %17 {offsets = [56, 0], sizes = [8, 32], strides = [1, 1]} : vector<80x32xf32> to vector<8x32xf32>
    %51 = arith.mulf %50, %49 : vector<8x32xf32>
    %52 = vector.extract_strided_slice %20 {offsets = [56, 0], sizes = [8, 32], strides = [1, 1]} : vector<80x32xf32> to vector<8x32xf32>
    %53 = arith.addf %51, %52 : vector<8x32xf32>
    %54 = vector.extract_strided_slice %17 {offsets = [64, 0], sizes = [8, 32], strides = [1, 1]} : vector<80x32xf32> to vector<8x32xf32>
    %55 = arith.mulf %54, %53 : vector<8x32xf32>
    %56 = vector.extract_strided_slice %20 {offsets = [64, 0], sizes = [8, 32], strides = [1, 1]} : vector<80x32xf32> to vector<8x32xf32>
    %57 = arith.addf %55, %56 : vector<8x32xf32>
    %58 = vector.extract_strided_slice %17 {offsets = [72, 0], sizes = [8, 32], strides = [1, 1]} : vector<80x32xf32> to vector<8x32xf32>
    %59 = arith.mulf %58, %57 : vector<8x32xf32>
    %60 = vector.extract_strided_slice %20 {offsets = [72, 0], sizes = [8, 32], strides = [1, 1]} : vector<80x32xf32> to vector<8x32xf32>
    %61 = arith.addf %59, %60 : vector<8x32xf32>
    %62 = vector.extract_strided_slice %19 {offsets = [72, 0], sizes = [8, 32], strides = [1, 1]} : vector<80x32xf32> to vector<8x32xf32>
    %63 = math.tanh %61 : vector<8x32xf32>
    %64 = arith.mulf %62, %63 : vector<8x32xf32>
    %c72 = arith.constant 72 : index
    %c0_12 = arith.constant 0 : index
    %65 = vector.load %arg0[%c72, %c0_12] : memref<80x32xf32, #tpu.memory_space<vmem>>, vector<8x32xf32>
    %c0_13 = arith.constant 0 : index
    %c0_14 = arith.constant 0 : index
    %66 = vector.load %arg5[%c0_13, %c0_14] : memref<32x32xf32, #tpu.memory_space<vmem>>, vector<32x32xf32>
    %cst_15 = arith.constant dense<0.000000e+00> : vector<8x32xf32>
    %67 = tpu.matmul %64, %66, %cst_15 {dimension_numbers = #tpu.dot_dimension_numbers<[1], [0], [0], [1], [0, 0, 1, 1], [], []>} : vector<8x32xf32>, vector<32x32xf32>, vector<8x32xf32> -> vector<8x32xf32>
    %c0_16 = arith.constant 0 : index
    %c0_17 = arith.constant 0 : index
    %68 = vector.load %arg6[%c0_16, %c0_17] : memref<32x32xf32, #tpu.memory_space<vmem>>, vector<32x32xf32>
    %cst_18 = arith.constant dense<0.000000e+00> : vector<8x32xf32>
    %69 = tpu.matmul %65, %68, %cst_18 {dimension_numbers = #tpu.dot_dimension_numbers<[1], [0], [0], [1], [0, 0, 1, 1], [], []>} : vector<8x32xf32>, vector<32x32xf32>, vector<8x32xf32> -> vector<8x32xf32>
    %70 = arith.addf %67, %69 : vector<8x32xf32>
    %c0_19 = arith.constant 0 : index
    %c0_20 = arith.constant 0 : index
    %71 = vector.load %arg7[%c0_19, %c0_20] : memref<1x32xf32, #tpu.memory_space<vmem>>, vector<1x32xf32>
    %72 = vector.broadcast %71 : vector<1x32xf32> to vector<8x32xf32>
    %73 = arith.addf %70, %72 : vector<8x32xf32>
    %c0_21 = arith.constant 0 : index
    %c0_22 = arith.constant 0 : index
    %74 = vector.load %arg8[%c0_21, %c0_22] : memref<32x1xf32, #tpu.memory_space<vmem>>, vector<32x1xf32>
    %cst_23 = arith.constant dense<0.000000e+00> : vector<8x1xf32>
    %75 = tpu.matmul %73, %74, %cst_23 {dimension_numbers = #tpu.dot_dimension_numbers<[1], [0], [0], [1], [0, 0, 1, 1], [], []>} : vector<8x32xf32>, vector<32x1xf32>, vector<8x1xf32> -> vector<8x1xf32>
    %c0_24 = arith.constant 0 : index
    %c0_25 = arith.constant 0 : index
    %76 = vector.load %arg9[%c0_24, %c0_25] : memref<1x1xf32, #tpu.memory_space<vmem>>, vector<1x1xf32>
    %77 = vector.broadcast %76 : vector<1x1xf32> to vector<8x1xf32>
    %78 = arith.addf %75, %77 : vector<8x1xf32>
    %c0_26 = arith.constant 0 : index
    %c0_27 = arith.constant 0 : index
    %79 = vector.load %arg10[%c0_26, %c0_27] : memref<8x1xf32, #tpu.memory_space<vmem>>, vector<8x1xf32>
    tpu.vector_store %arg10[%c0_26, %c0_27], %78 {strides = array<i32>} : memref<8x1xf32, #tpu.memory_space<vmem>>, vector<8x1xf32>,
    return
  }
}

</mosaic_0001>

<llo_original>
// kernel: tpu_custom_call.1
$region0: #{tpu_custom_call.1}
  #allocation0 [shape = 'u32[]', space=smem, size = 0x4, offset = 0x4, fixed_abs, tag = 'smem constant byte address 0x4 - core index']
  #allocation1 [shape = 'u32[144,128]{1,0:T(1,128)}', space=vmem, size = 0x12000, scoped, tag = 'internal scratch']
  #allocation2 [shape = 'f32[1,1]{1,0:T(1,128)S(1)}', space=vmem, size = 0x200, scoped, tag = 'scoped memory for tpu_custom_call.1']
  %s0 = inlined_call_operand.vmem [shape: f32[80,32], index: 0, kind: input, shape index: {}]
  %s1 = inlined_call_operand.vmem [shape: f32[80,8], index: 1, kind: input, shape index: {}]
  %s2 = inlined_call_operand.vmem [shape: f32[8,128], index: 2, kind: input, shape index: {}]
  %s3 = inlined_call_operand.vmem [shape: f32[32,128], index: 3, kind: input, shape index: {}]
  %s4 = inlined_call_operand.vmem [shape: f32[1,128], index: 4, kind: input, shape index: {}]
  %s5 = inlined_call_operand.vmem [shape: f32[32,32], index: 5, kind: input, shape index: {}]
  %s6 = inlined_call_operand.vmem [shape: f32[32,32], index: 6, kind: input, shape index: {}]
  %s7 = inlined_call_operand.vmem [shape: f32[1,32], index: 7, kind: input, shape index: {}]
  %s8 = inlined_call_operand.vmem [shape: f32[32,1], index: 8, kind: input, shape index: {}]
  %s9 = inlined_call_operand.<no memory space> [shape: f32[1,1], index: 9, kind: input, shape index: {}]
  %s10 = inlined_call_operand.vmem [shape: f32[8,1], index: 10, kind: output, shape index: {}]
  %s11 = sld [smem:[#allocation0]]
  $region50: #{tpu_custom_call.1} parent=0
    _
  %s13 = ssub.s32 1, %s11
  %s14 = scalar_select 0, %s13, %s11
  %v15 = vstv %s9
  %16 = vst [vmem:[#allocation2] sm:$0x1] %v15
  // Predicated region
  $region2: #{tpu_custom_call.1} parent=0 // pred_check
    _
  $region3: #{tpu_custom_call.1} parent=0 // pred_check_branch
    %18 = sbr.rel (0) target = $region5
  $region4: #{tpu_custom_call.1} parent=0 // pred_region
    _
  $region5: #{tpu_custom_call.1} parent=0 // pred_fallthru
    _
  // Predicated region
  $region6: #{tpu_custom_call.1} parent=0 // pred_check
    _
  $region7: #{tpu_custom_call.1} parent=0 // pred_check_branch
    %20 = sbr.rel (0) target = $region9
  $region8: #{tpu_custom_call.1} parent=0 // pred_region
    _
  $region9: #{tpu_custom_call.1} parent=0 // pred_fallthru
    _
  // Predicated region
  $region10: #{tpu_custom_call.1} parent=0 // pred_check
    _
  $region11: #{tpu_custom_call.1} parent=0 // pred_check_branch
    %22 = sbr.rel (0) target = $region13
  $region12: #{tpu_custom_call.1} parent=0 // pred_region
    _
  $region13: #{tpu_custom_call.1} parent=0 // pred_fallthru
    _
  // Predicated region
  $region14: #{tpu_custom_call.1} parent=0 // pred_check
    _
  $region15: #{tpu_custom_call.1} parent=0 // pred_check_branch
    %24 = sbr.rel (0) target = $region17
  $region16: #{tpu_custom_call.1} parent=0 // pred_region
    _
  $region17: #{tpu_custom_call.1} parent=0 // pred_fallthru
    _
  // Predicated region
  $region18: #{tpu_custom_call.1} parent=0 // pred_check
    _
  $region19: #{tpu_custom_call.1} parent=0 // pred_check_branch
    %26 = sbr.rel (0) target = $region21
  $region20: #{tpu_custom_call.1} parent=0 // pred_region
    _
  $region21: #{tpu_custom_call.1} parent=0 // pred_fallthru
    _
  // Predicated region
  $region22: #{tpu_custom_call.1} parent=0 // pred_check
    _
  $region23: #{tpu_custom_call.1} parent=0 // pred_check_branch
    %28 = sbr.rel (0) target = $region25
  $region24: #{tpu_custom_call.1} parent=0 // pred_region
    _
  $region25: #{tpu_custom_call.1} parent=0 // pred_fallthru
    _
  // Predicated region
  $region26: #{tpu_custom_call.1} parent=0 // pred_check
    _
  $region27: #{tpu_custom_call.1} parent=0 // pred_check_branch
    %30 = sbr.rel (0) target = $region29
  $region28: #{tpu_custom_call.1} parent=0 // pred_region
    _
  $region29: #{tpu_custom_call.1} parent=0 // pred_fallthru
    _
  // Predicated region
  $region30: #{tpu_custom_call.1} parent=0 // pred_check
    _
  $region31: #{tpu_custom_call.1} parent=0 // pred_check_branch
    %32 = sbr.rel (0) target = $region33
  $region32: #{tpu_custom_call.1} parent=0 // pred_region
    _
  $region33: #{tpu_custom_call.1} parent=0 // pred_fallthru
    _
  // Predicated region
  $region34: #{tpu_custom_call.1} parent=0 // pred_check
    _
  $region35: #{tpu_custom_call.1} parent=0 // pred_check_branch
    %34 = sbr.rel (0) target = $region37
  $region36: #{tpu_custom_call.1} parent=0 // pred_region
    _
  $region37: #{tpu_custom_call.1} parent=0 // pred_fallthru
    _
  // Predicated region
  $region38: #{tpu_custom_call.1} parent=0 // pred_check
    _
  $region39: #{tpu_custom_call.1} parent=0 // pred_check_branch
    %36 = sbr.rel (0) target = $region41
  $region40: #{tpu_custom_call.1} parent=0 // pred_region
    _
  $region41: #{tpu_custom_call.1} parent=0 // pred_fallthru
    _
  %v37 = vld [vmem:[%s1] sm:$0xff]
  %v38 = vld [vmem:[%s1 + $0x8] sm:$0xff]
  %v39 = vld [vmem:[%s1 + $0x10] sm:$0xff]
  %v40 = vld [vmem:[%s1 + $0x18] sm:$0xff]
  %v41 = vld [vmem:[%s1 + $0x20] sm:$0xff]
  %v42 = vld [vmem:[%s1 + $0x28] sm:$0xff]
  %v43 = vld [vmem:[%s1 + $0x30] sm:$0xff]
  %v44 = vld [vmem:[%s1 + $0x38] sm:$0xff]
  %v45 = vld [vmem:[%s1 + $0x40] sm:$0xff]
  %v46 = vld [vmem:[%s1 + $0x48] sm:$0xff]
  %v47 = vld [vmem:[%s2] sm:$0xff]
  %v48 = vld [vmem:[%s0] sm:$0xff]
  %v49 = vld [vmem:[%s0 + $0x8] sm:$0xff]
  %v50 = vld [vmem:[%s0 + $0x10] sm:$0xff]
  %v51 = vld [vmem:[%s0 + $0x18] sm:$0xff]
  %v52 = vld [vmem:[%s0 + $0x20] sm:$0xff]
  %v53 = vld [vmem:[%s0 + $0x28] sm:$0xff]
  %v54 = vld [vmem:[%s0 + $0x30] sm:$0xff]
  %v55 = vld [vmem:[%s0 + $0x38] sm:$0xff]
  %v56 = vld [vmem:[%s0 + $0x40] sm:$0xff]
  %v57 = vld [vmem:[%s0 + $0x48] sm:$0xff]
  %v58 = vld [vmem:[%s3] sm:$0xff]
  %v59 = vld [vmem:[%s3 + $0x8] sm:$0xff]
  %v60 = vld [vmem:[%s3 + $0x10] sm:$0xff]
  %v61 = vld [vmem:[%s3 + $0x18] sm:$0xff]
  %vm62 = vcmask 261120
  %v64 = vsel %vm62, %v48, 0
  %v67 = vsel %vm62, %v49, 0
  %v70 = vsel %vm62, %v50, 0
  %v73 = vsel %vm62, %v51, 0
  %v76 = vsel %vm62, %v52, 0
  %v79 = vsel %vm62, %v53, 0
  %v82 = vsel %vm62, %v54, 0
  %v85 = vsel %vm62, %v55, 0
  %v88 = vsel %vm62, %v56, 0
  %v91 = vsel %vm62, %v57, 0
  %93 = vmatprep.subr.mxu0 0.0
  %94 = vmatpush1.msra.mxu0 %v58
  %95 = vmatprep.subr.mxu0 0.0
  %96 = vmatpush1.msra.mxu0 %v59
  %97 = vmatprep.subr.mxu0 0.0
  %98 = vmatpush1.msra.mxu0 %v60
  %99 = vmatprep.subr.mxu0 0.0
  %100 = vmatpush1.msra.mxu0 %v61
  %101 = vmatprep.subr.mxu0 0.0
  %102 = vmatpush1.msra.mxu0 0.0
  %103 = vmatprep.subr.mxu0 0.0
  %104 = vmatpush1.msra.mxu0 0.0
  %105 = vmatprep.subr.mxu0 0.0
  %106 = vmatpush1.msra.mxu0 0.0
  %107 = vmatprep.subr.mxu0 0.0
  %108 = vmatpush1.msra.mxu0 0.0
  %109 = vmatprep.subr.mxu0 0.0
  %110 = vmatpush1.msra.mxu0 0.0
  %111 = vmatprep.subr.mxu0 0.0
  %112 = vmatpush1.msra.mxu0 0.0
  %113 = vmatprep.subr.mxu0 0.0
  %114 = vmatpush1.msra.mxu0 0.0
  %115 = vmatprep.subr.mxu0 0.0
  %116 = vmatpush1.msra.mxu0 0.0
  %117 = vmatprep.subr.mxu0 0.0
  %118 = vmatpush1.msra.mxu0 0.0
  %119 = vmatprep.subr.mxu0 0.0
  %120 = vmatpush1.msra.mxu0 0.0
  %121 = vmatprep.subr.mxu0 0.0
  %122 = vmatpush1.msra.mxu0 0.0
  %123 = vmatprep.subr.mxu0 0.0
  %124 = vmatpush1.msra.mxu0 0.0
  %125 = vmatprep.subr.mxu0 0.0
  %126 = vmatpush1.msra.mxu0 0.0
  %127 = vmatprep.subr.mxu0 0.0
  %128 = vmatpush1.msra.mxu0 0.0
  %129 = vmatprep.subr.mxu0 0.0
  %130 = vmatpush1.msra.mxu0 0.0
  %131 = vmatprep.subr.mxu0 0.0
  %132 = vmatpush1.msra.mxu0 0.0
  %133 = vmatprep.subr.mxu0 0.0
  %134 = vmatpush1.msra.mxu0 0.0
  %135 = vmatprep.subr.mxu0 0.0
  %136 = vmatpush1.msra.mxu0 0.0
  %137 = vmatprep.subr.mxu0 0.0
  %138 = vmatpush1.msra.mxu0 0.0
  %139 = vmatprep.subr.mxu0 0.0
  %140 = vmatpush1.msra.mxu0 0.0
  %141 = vmatprep.subr.mxu0 0.0
  %142 = vmatpush1.msra.mxu0 0.0
  %143 = vmatprep.subr.mxu0 0.0
  %144 = vmatpush1.msra.mxu0 0.0
  %145 = vmatprep.subr.mxu0 0.0
  %146 = vmatpush1.msra.mxu0 0.0
  %147 = vmatprep.subr.mxu0 0.0
  %148 = vmatpush1.msra.mxu0 0.0
  %149 = vmatprep.subr.mxu0 0.0
  %150 = vmatpush1.msra.mxu0 0.0
  %151 = vmatprep.subr.mxu0 0.0
  %152 = vmatpush1.msra.mxu0 0.0
  %153 = vmatprep.subr.mxu0 0.0
  %154 = vmatpush1.msra.mxu0 0.0
  %155 = vmatprep.subr.mxu0 0.0
  %156 = vmatpush1.msra.mxu0 0.0
  %157 = vmatprep.mubr.f32.mxu0 0.0
  %158 = vmatmul.mubr.f32.gmra.mrb[0].mxu0 %v64
  %v159 = vpop.f32.mrb[0].mxu0
  %v160 = vadd.f32 0.0, %v159
  %v161 = vpop.f32.mrb[0].mxu0
  %162 = vmatprep.mubr.f32.mxu0 0.0
  %163 = vmatmul.mubr.f32.gmra.mrb[0].mxu0 %v67
  %v164 = vpop.f32.mrb[0].mxu0
  %v165 = vadd.f32 0.0, %v164
  %v166 = vpop.f32.mrb[0].mxu0
  %167 = vmatprep.mubr.f32.mxu0 0.0
  %168 = vmatmul.mubr.f32.gmra.mrb[0].mxu0 %v70
  %v169 = vpop.f32.mrb[0].mxu0
  %v170 = vadd.f32 0.0, %v169
  %v171 = vpop.f32.mrb[0].mxu0
  %172 = vmatprep.mubr.f32.mxu0 0.0
  %173 = vmatmul.mubr.f32.gmra.mrb[0].mxu0 %v73
  %v174 = vpop.f32.mrb[0].mxu0
  %v175 = vadd.f32 0.0, %v174
  %v176 = vpop.f32.mrb[0].mxu0
  %177 = vmatprep.mubr.f32.mxu0 0.0
  %178 = vmatmul.mubr.f32.gmra.mrb[0].mxu0 %v76
  %v179 = vpop.f32.mrb[0].mxu0
  %v180 = vadd.f32 0.0, %v179
  %v181 = vpop.f32.mrb[0].mxu0
  %182 = vmatprep.mubr.f32.mxu0 0.0
  %183 = vmatmul.mubr.f32.gmra.mrb[0].mxu0 %v79
  %v184 = vpop.f32.mrb[0].mxu0
  %v185 = vadd.f32 0.0, %v184
  %v186 = vpop.f32.mrb[0].mxu0
  %187 = vmatprep.mubr.f32.mxu0 0.0
  %188 = vmatmul.mubr.f32.gmra.mrb[0].mxu0 %v82
  %v189 = vpop.f32.mrb[0].mxu0
  %v190 = vadd.f32 0.0, %v189
  %v191 = vpop.f32.mrb[0].mxu0
  %192 = vmatprep.mubr.f32.mxu0 0.0
  %193 = vmatmul.mubr.f32.gmra.mrb[0].mxu0 %v85
  %v194 = vpop.f32.mrb[0].mxu0
  %v195 = vadd.f32 0.0, %v194
  %v196 = vpop.f32.mrb[0].mxu0
  %197 = vmatprep.mubr.f32.mxu0 0.0
  %198 = vmatmul.mubr.f32.gmra.mrb[0].mxu0 %v88
  %v199 = vpop.f32.mrb[0].mxu0
  %v200 = vadd.f32 0.0, %v199
  %v201 = vpop.f32.mrb[0].mxu0
  %202 = vmatprep.mubr.f32.mxu0 0.0
  %203 = vmatmul.mubr.f32.gmra.mrb[0].mxu0 %v91
  %v204 = vpop.f32.mrb[0].mxu0
  %v205 = vadd.f32 0.0, %v204
  %v206 = vpop.f32.mrb[0].mxu0
  %207 = vdwg.mxu0
  %vm208 = vcmask 64512
  %v210 = vsel %vm208, %v37, 0
  %v213 = vsel %vm208, %v38, 0
  %v216 = vsel %vm208, %v39, 0
  %v219 = vsel %vm208, %v40, 0
  %v222 = vsel %vm208, %v41, 0
  %v225 = vsel %vm208, %v42, 0
  %v228 = vsel %vm208, %v43, 0
  %v231 = vsel %vm208, %v44, 0
  %v234 = vsel %vm208, %v45, 0
  %v237 = vsel %vm208, %v46, 0
  %239 = vmatprep.subr.mxu0 0.0
  %240 = vmatpush1.msra.mxu0 %v47
  %241 = vmatprep.subr.mxu0 0.0
  %242 = vmatpush1.msra.mxu0 0.0
  %243 = vmatprep.subr.mxu0 0.0
  %244 = vmatpush1.msra.mxu0 0.0
  %245 = vmatprep.subr.mxu0 0.0
  %246 = vmatpush1.msra.mxu0 0.0
  %247 = vmatprep.subr.mxu0 0.0
  %248 = vmatpush1.msra.mxu0 0.0
  %249 = vmatprep.subr.mxu0 0.0
  %250 = vmatpush1.msra.mxu0 0.0
  %251 = vmatprep.subr.mxu0 0.0
  %252 = vmatpush1.msra.mxu0 0.0
  %253 = vmatprep.subr.mxu0 0.0
  %254 = vmatpush1.msra.mxu0 0.0
  %255 = vmatprep.subr.mxu0 0.0
  %256 = vmatpush1.msra.mxu0 0.0
  %257 = vmatprep.subr.mxu0 0.0
  %258 = vmatpush1.msra.mxu0 0.0
  %259 = vmatprep.subr.mxu0 0.0
  %260 = vmatpush1.msra.mxu0 0.0
  %261 = vmatprep.subr.mxu0 0.0
  %262 = vmatpush1.msra.mxu0 0.0
  %263 = vmatprep.subr.mxu0 0.0
  %264 = vmatpush1.msra.mxu0 0.0
  %265 = vmatprep.subr.mxu0 0.0
  %266 = vmatpush1.msra.mxu0 0.0
  %267 = vmatprep.subr.mxu0 0.0
  %268 = vmatpush1.msra.mxu0 0.0
  %269 = vmatprep.subr.mxu0 0.0
  %270 = vmatpush1.msra.mxu0 0.0
  %271 = vmatprep.subr.mxu0 0.0
  %272 = vmatpush1.msra.mxu0 0.0
  %273 = vmatprep.subr.mxu0 0.0
  %274 = vmatpush1.msra.mxu0 0.0
  %275 = vmatprep.subr.mxu0 0.0
  %276 = vmatpush1.msra.mxu0 0.0
  %277 = vmatprep.subr.mxu0 0.0
  %278 = vmatpush1.msra.mxu0 0.0
  %279 = vmatprep.subr.mxu0 0.0
  %280 = vmatpush1.msra.mxu0 0.0
  %281 = vmatprep.subr.mxu0 0.0
  %282 = vmatpush1.msra.mxu0 0.0
  %283 = vmatprep.subr.mxu0 0.0
  %284 = vmatpush1.msra.mxu0 0.0
  %285 = vmatprep.subr.mxu0 0.0
  %286 = vmatpush1.msra.mxu0 0.0
  %287 = vmatprep.subr.mxu0 0.0
  %288 = vmatpush1.msra.mxu0 0.0
  %289 = vmatprep.subr.mxu0 0.0
  %290 = vmatpush1.msra.mxu0 0.0
  %291 = vmatprep.subr.mxu0 0.0
  %292 = vmatpush1.msra.mxu0 0.0
  %293 = vmatprep.subr.mxu0 0.0
  %294 = vmatpush1.msra.mxu0 0.0
  %295 = vmatprep.subr.mxu0 0.0
  %296 = vmatpush1.msra.mxu0 0.0
  %297 = vmatprep.subr.mxu0 0.0
  %298 = vmatpush1.msra.mxu0 0.0
  %299 = vmatprep.subr.mxu0 0.0
  %300 = vmatpush1.msra.mxu0 0.0
  %301 = vmatprep.subr.mxu0 0.0
  %302 = vmatpush1.msra.mxu0 0.0
  %303 = vmatprep.mubr.f32.mxu0 0.0
  %304 = vmatmul.mubr.f32.gmra.mrb[0].mxu0 %v210
  %v305 = vpop.f32.mrb[0].mxu0
  %v306 = vadd.f32 %v160, %v305
  %v307 = vpop.f32.mrb[0].mxu0
  %308 = vmatprep.mubr.f32.mxu0 0.0
  %309 = vmatmul.mubr.f32.gmra.mrb[0].mxu0 %v213
  %v310 = vpop.f32.mrb[0].mxu0
  %v311 = vadd.f32 %v165, %v310
  %v312 = vpop.f32.mrb[0].mxu0
  %313 = vmatprep.mubr.f32.mxu0 0.0
  %314 = vmatmul.mubr.f32.gmra.mrb[0].mxu0 %v216
  %v315 = vpop.f32.mrb[0].mxu0
  %v316 = vadd.f32 %v170, %v315
  %v317 = vpop.f32.mrb[0].mxu0
  %318 = vmatprep.mubr.f32.mxu0 0.0
  %319 = vmatmul.mubr.f32.gmra.mrb[0].mxu0 %v219
  %v320 = vpop.f32.mrb[0].mxu0
  %v321 = vadd.f32 %v175, %v320
  %v322 = vpop.f32.mrb[0].mxu0
  %323 = vmatprep.mubr.f32.mxu0 0.0
  %324 = vmatmul.mubr.f32.gmra.mrb[0].mxu0 %v222
  %v325 = vpop.f32.mrb[0].mxu0
  %v326 = vadd.f32 %v180, %v325
  %v327 = vpop.f32.mrb[0].mxu0
  %328 = vmatprep.mubr.f32.mxu0 0.0
  %329 = vmatmul.mubr.f32.gmra.mrb[0].mxu0 %v225
  %v330 = vpop.f32.mrb[0].mxu0
  %v331 = vadd.f32 %v185, %v330
  %v332 = vpop.f32.mrb[0].mxu0
  %333 = vmatprep.mubr.f32.mxu0 0.0
  %334 = vmatmul.mubr.f32.gmra.mrb[0].mxu0 %v228
  %v335 = vpop.f32.mrb[0].mxu0
  %v336 = vadd.f32 %v190, %v335
  %v337 = vpop.f32.mrb[0].mxu0
  %338 = vmatprep.mubr.f32.mxu0 0.0
  %339 = vmatmul.mubr.f32.gmra.mrb[0].mxu0 %v231
  %v340 = vpop.f32.mrb[0].mxu0
  %v341 = vadd.f32 %v195, %v340
  %v342 = vpop.f32.mrb[0].mxu0
  %343 = vmatprep.mubr.f32.mxu0 0.0
  %344 = vmatmul.mubr.f32.gmra.mrb[0].mxu0 %v234
  %v345 = vpop.f32.mrb[0].mxu0
  %v346 = vadd.f32 %v200, %v345
  %v347 = vpop.f32.mrb[0].mxu0
  %348 = vmatprep.mubr.f32.mxu0 0.0
  %349 = vmatmul.mubr.f32.gmra.mrb[0].mxu0 %v237
  %v350 = vpop.f32.mrb[0].mxu0
  %v351 = vadd.f32 %v205, %v350
  %v352 = vpop.f32.mrb[0].mxu0
  %353 = vdwg.mxu0
  %v354 = vld [vmem:[%s4] sm:$0x1]
  %v356 = vlaneseq
  %v357 = vshrl.u32 %v356, 7
  %v358 = vsub.s32 0, %v357
  %v359 = vrot.slane %v354, %v358
  %v361 = vadd.f32 %v306, %v359
  %v362 = vadd.f32 %v311, %v359
  %v363 = vadd.f32 %v316, %v359
  %v364 = vadd.f32 %v321, %v359
  %v365 = vadd.f32 %v326, %v359
  %v366 = vadd.f32 %v331, %v359
  %v367 = vadd.f32 %v336, %v359
  %v368 = vadd.f32 %v341, %v359
  %v369 = vadd.f32 %v346, %v359
  %v370 = vadd.f32 %v351, %v359
  %v371 = vxor.u32 %v361, 2147483648
  %v372 = vxor.u32 %v362, 2147483648
  %v373 = vxor.u32 %v363, 2147483648
  %v374 = vxor.u32 %v364, 2147483648
  %v375 = vxor.u32 %v365, 2147483648
  %v376 = vxor.u32 %v366, 2147483648
  %v377 = vxor.u32 %v367, 2147483648
  %v378 = vxor.u32 %v368, 2147483648
  %v379 = vxor.u32 %v369, 2147483648
  %v380 = vxor.u32 %v370, 2147483648
  %v381 = vmul.f32 %v371, 1.442695
  %v382 = vpow.pop %v381
  %v383 = vmul.f32 %v372, 1.442695
  %v384 = vpow.pop %v383
  %v385 = vmul.f32 %v373, 1.442695
  %v386 = vpow.pop %v385
  %v387 = vmul.f32 %v374, 1.442695
  %v388 = vpow.pop %v387
  %v389 = vmul.f32 %v375, 1.442695
  %v390 = vpow.pop %v389
  %v391 = vmul.f32 %v376, 1.442695
  %v392 = vpow.pop %v391
  %v393 = vmul.f32 %v377, 1.442695
  %v394 = vpow.pop %v393
  %v395 = vmul.f32 %v378, 1.442695
  %v396 = vpow.pop %v395
  %v397 = vmul.f32 %v379, 1.442695
  %v398 = vpow.pop %v397
  %v399 = vmul.f32 %v380, 1.442695
  %v400 = vpow.pop %v399
  %v401 = vadd.f32 %v382, 1.0
  %v402 = vadd.f32 %v384, 1.0
  %v403 = vadd.f32 %v386, 1.0
  %v404 = vadd.f32 %v388, 1.0
  %v405 = vadd.f32 %v390, 1.0
  %v406 = vadd.f32 %v392, 1.0
  %v407 = vadd.f32 %v394, 1.0
  %v408 = vadd.f32 %v396, 1.0
  %v409 = vadd.f32 %v398, 1.0
  %v410 = vadd.f32 %v400, 1.0
  %v411 = vrcp.pop %v401
  %v412 = vmul.f32 1.0, %v411
  %v413 = vrcp.pop %v402
  %v414 = vmul.f32 1.0, %v413
  %v415 = vrcp.pop %v403
  %v416 = vmul.f32 1.0, %v415
  %v417 = vrcp.pop %v404
  %v418 = vmul.f32 1.0, %v417
  %v419 = vrcp.pop %v405
  %v420 = vmul.f32 1.0, %v419
  %v421 = vrcp.pop %v406
  %v422 = vmul.f32 1.0, %v421
  %v423 = vrcp.pop %v407
  %v424 = vmul.f32 1.0, %v423
  %v425 = vrcp.pop %v408
  %v426 = vmul.f32 1.0, %v425
  %v427 = vrcp.pop %v409
  %v428 = vmul.f32 1.0, %v427
  %v429 = vrcp.pop %v410
  %v430 = vmul.f32 1.0, %v429
  %v431 = vtanh.pop %v361
  %v432 = vtanh.pop %v362
  %v433 = vtanh.pop %v363
  %v434 = vtanh.pop %v364
  %v435 = vtanh.pop %v365
  %v436 = vtanh.pop %v366
  %v437 = vtanh.pop %v367
  %v438 = vtanh.pop %v368
  %v439 = vtanh.pop %v369
  %v440 = vtanh.pop %v370
  %451 = vrot.lane.b32.xlu0 %v431, 64
  %v452 = vpop.permute.xlu0 %451
  %453 = vrot.lane.b32.xlu0 %v432, 64
  %v454 = vpop.permute.xlu0 %453
  %455 = vrot.lane.b32.xlu0 %v433, 64
  %v456 = vpop.permute.xlu0 %455
  %457 = vrot.lane.b32.xlu0 %v434, 64
  %v458 = vpop.permute.xlu0 %457
  %459 = vrot.lane.b32.xlu0 %v435, 64
  %v460 = vpop.permute.xlu0 %459
  %461 = vrot.lane.b32.xlu0 %v436, 64
  %v462 = vpop.permute.xlu0 %461
  %463 = vrot.lane.b32.xlu0 %v437, 64
  %v464 = vpop.permute.xlu0 %463
  %465 = vrot.lane.b32.xlu0 %v438, 64
  %v466 = vpop.permute.xlu0 %465
  %467 = vrot.lane.b32.xlu0 %v439, 64
  %v468 = vpop.permute.xlu0 %467
  %469 = vrot.lane.b32.xlu0 %v440, 64
  %v470 = vpop.permute.xlu0 %469
  %v481 = vmul.f32 %v412, %v452
  %v482 = vmul.f32 %v414, %v454
  %v483 = vmul.f32 %v416, %v456
  %v484 = vmul.f32 %v418, %v458
  %v485 = vmul.f32 %v420, %v460
  %v486 = vmul.f32 %v422, %v462
  %v487 = vmul.f32 %v424, %v464
  %v488 = vmul.f32 %v426, %v466
  %v489 = vmul.f32 %v428, %v468
  %v490 = vmul.f32 %v430, %v470
  %v491 = vmul.f32 %v412, 0.0
  %493 = vrot.lane.b32.xlu0 %v481, 32
  %v494 = vpop.permute.xlu0 %493
  %v496 = vadd.f32 %v491, %v494
  %v497 = vmul.f32 %v414, %v496
  %499 = vrot.lane.b32.xlu0 %v482, 32
  %v500 = vpop.permute.xlu0 %499
  %v502 = vadd.f32 %v497, %v500
  %v503 = vmul.f32 %v416, %v502
  %505 = vrot.lane.b32.xlu0 %v483, 32
  %v506 = vpop.permute.xlu0 %505
  %v508 = vadd.f32 %v503, %v506
  %v509 = vmul.f32 %v418, %v508
  %511 = vrot.lane.b32.xlu0 %v484, 32
  %v512 = vpop.permute.xlu0 %511
  %v514 = vadd.f32 %v509, %v512
  %v515 = vmul.f32 %v420, %v514
  %517 = vrot.lane.b32.xlu0 %v485, 32
  %v518 = vpop.permute.xlu0 %517
  %v520 = vadd.f32 %v515, %v518
  %v521 = vmul.f32 %v422, %v520
  %523 = vrot.lane.b32.xlu0 %v486, 32
  %v524 = vpop.permute.xlu0 %523
  %v526 = vadd.f32 %v521, %v524
  %v527 = vmul.f32 %v424, %v526
  %529 = vrot.lane.b32.xlu0 %v487, 32
  %v530 = vpop.permute.xlu0 %529
  %v532 = vadd.f32 %v527, %v530
  %v533 = vmul.f32 %v426, %v532
  %535 = vrot.lane.b32.xlu0 %v488, 32
  %v536 = vpop.permute.xlu0 %535
  %v538 = vadd.f32 %v533, %v536
  %v539 = vmul.f32 %v428, %v538
  %541 = vrot.lane.b32.xlu0 %v489, 32
  %v542 = vpop.permute.xlu0 %541
  %v544 = vadd.f32 %v539, %v542
  %v545 = vmul.f32 %v430, %v544
  %547 = vrot.lane.b32.xlu0 %v490, 32
  %v548 = vpop.permute.xlu0 %547
  %v550 = vadd.f32 %v545, %v548
  %v551 = vtanh.pop %v550
  %553 = vrot.lane.b32.xlu0 %v551, 64
  %v554 = vpop.permute.xlu0 %553
  %v556 = vmul.f32 %v430, %v554
  %v557 = vld [vmem:[%s5] sm:$0xff]
  %v558 = vld [vmem:[%s5 + $0x8] sm:$0xff]
  %v559 = vld [vmem:[%s5 + $0x10] sm:$0xff]
  %v560 = vld [vmem:[%s5 + $0x18] sm:$0xff]
  %v561 = vld [vmem:[%s6] sm:$0xff]
  %v562 = vld [vmem:[%s6 + $0x8] sm:$0xff]
  %v563 = vld [vmem:[%s6 + $0x10] sm:$0xff]
  %v564 = vld [vmem:[%s6 + $0x18] sm:$0xff]
  %565 = vmatprep.subr.mxu0 0.0
  %566 = vmatpush1.msra.mxu0 %v561
  %567 = vmatprep.subr.mxu0 0.0
  %568 = vmatpush1.msra.mxu0 %v562
  %569 = vmatprep.subr.mxu0 0.0
  %570 = vmatpush1.msra.mxu0 %v563
  %571 = vmatprep.subr.mxu0 0.0
  %572 = vmatpush1.msra.mxu0 %v564
  %573 = vmatprep.subr.mxu0 0.0
  %574 = vmatpush1.msra.mxu0 0.0
  %575 = vmatprep.subr.mxu0 0.0
  %576 = vmatpush1.msra.mxu0 0.0
  %577 = vmatprep.subr.mxu0 0.0
  %578 = vmatpush1.msra.mxu0 0.0
  %579 = vmatprep.subr.mxu0 0.0
  %580 = vmatpush1.msra.mxu0 0.0
  %581 = vmatprep.subr.mxu0 0.0
  %582 = vmatpush1.msra.mxu0 0.0
  %583 = vmatprep.subr.mxu0 0.0
  %584 = vmatpush1.msra.mxu0 0.0
  %585 = vmatprep.subr.mxu0 0.0
  %586 = vmatpush1.msra.mxu0 0.0
  %587 = vmatprep.subr.mxu0 0.0
  %588 = vmatpush1.msra.mxu0 0.0
  %589 = vmatprep.subr.mxu0 0.0
  %590 = vmatpush1.msra.mxu0 0.0
  %591 = vmatprep.subr.mxu0 0.0
  %592 = vmatpush1.msra.mxu0 0.0
  %593 = vmatprep.subr.mxu0 0.0
  %594 = vmatpush1.msra.mxu0 0.0
  %595 = vmatprep.subr.mxu0 0.0
  %596 = vmatpush1.msra.mxu0 0.0
  %597 = vmatprep.subr.mxu0 0.0
  %598 = vmatpush1.msra.mxu0 0.0
  %599 = vmatprep.subr.mxu0 0.0
  %600 = vmatpush1.msra.mxu0 0.0
  %601 = vmatprep.subr.mxu0 0.0
  %602 = vmatpush1.msra.mxu0 0.0
  %603 = vmatprep.subr.mxu0 0.0
  %604 = vmatpush1.msra.mxu0 0.0
  %605 = vmatprep.subr.mxu0 0.0
  %606 = vmatpush1.msra.mxu0 0.0
  %607 = vmatprep.subr.mxu0 0.0
  %608 = vmatpush1.msra.mxu0 0.0
  %609 = vmatprep.subr.mxu0 0.0
  %610 = vmatpush1.msra.mxu0 0.0
  %611 = vmatprep.subr.mxu0 0.0
  %612 = vmatpush1.msra.mxu0 0.0
  %613 = vmatprep.subr.mxu0 0.0
  %614 = vmatpush1.msra.mxu0 0.0
  %615 = vmatprep.subr.mxu0 0.0
  %616 = vmatpush1.msra.mxu0 0.0
  %617 = vmatprep.subr.mxu0 0.0
  %618 = vmatpush1.msra.mxu0 0.0
  %619 = vmatprep.subr.mxu0 0.0
  %620 = vmatpush1.msra.mxu0 0.0
  %621 = vmatprep.subr.mxu0 0.0
  %622 = vmatpush1.msra.mxu0 0.0
  %623 = vmatprep.subr.mxu0 0.0
  %624 = vmatpush1.msra.mxu0 0.0
  %625 = vmatprep.subr.mxu0 0.0
  %626 = vmatpush1.msra.mxu0 0.0
  %627 = vmatprep.subr.mxu0 0.0
  %628 = vmatpush1.msra.mxu0 0.0
  %629 = vmatprep.mubr.f32.mxu0 0.0
  %630 = vmatmul.mubr.f32.gmra.mrb[0].mxu0 %v91
  %v631 = vpop.f32.mrb[0].mxu0
  %v632 = vadd.f32 0.0, %v631
  %v633 = vpop.f32.mrb[0].mxu0
  %634 = vdwg.mxu0
  %636 = vrot.lane.b32.xlu0 %v556, 32
  %v637 = vpop.permute.xlu0 %636
  %v638 = vsel %vm62, %v637, 0
  %640 = vmatprep.subr.mxu0 0.0
  %641 = vmatpush1.msra.mxu0 %v557
  %642 = vmatprep.subr.mxu0 0.0
  %643 = vmatpush1.msra.mxu0 %v558
  %644 = vmatprep.subr.mxu0 0.0
  %645 = vmatpush1.msra.mxu0 %v559
  %646 = vmatprep.subr.mxu0 0.0
  %647 = vmatpush1.msra.mxu0 %v560
  %648 = vmatprep.subr.mxu0 0.0
  %649 = vmatpush1.msra.mxu0 0.0
  %650 = vmatprep.subr.mxu0 0.0
  %651 = vmatpush1.msra.mxu0 0.0
  %652 = vmatprep.subr.mxu0 0.0
  %653 = vmatpush1.msra.mxu0 0.0
  %654 = vmatprep.subr.mxu0 0.0
  %655 = vmatpush1.msra.mxu0 0.0
  %656 = vmatprep.subr.mxu0 0.0
  %657 = vmatpush1.msra.mxu0 0.0
  %658 = vmatprep.subr.mxu0 0.0
  %659 = vmatpush1.msra.mxu0 0.0
  %660 = vmatprep.subr.mxu0 0.0
  %661 = vmatpush1.msra.mxu0 0.0
  %662 = vmatprep.subr.mxu0 0.0
  %663 = vmatpush1.msra.mxu0 0.0
  %664 = vmatprep.subr.mxu0 0.0
  %665 = vmatpush1.msra.mxu0 0.0
  %666 = vmatprep.subr.mxu0 0.0
  %667 = vmatpush1.msra.mxu0 0.0
  %668 = vmatprep.subr.mxu0 0.0
  %669 = vmatpush1.msra.mxu0 0.0
  %670 = vmatprep.subr.mxu0 0.0
  %671 = vmatpush1.msra.mxu0 0.0
  %672 = vmatprep.subr.mxu0 0.0
  %673 = vmatpush1.msra.mxu0 0.0
  %674 = vmatprep.subr.mxu0 0.0
  %675 = vmatpush1.msra.mxu0 0.0
  %676 = vmatprep.subr.mxu0 0.0
  %677 = vmatpush1.msra.mxu0 0.0
  %678 = vmatprep.subr.mxu0 0.0
  %679 = vmatpush1.msra.mxu0 0.0
  %680 = vmatprep.subr.mxu0 0.0
  %681 = vmatpush1.msra.mxu0 0.0
  %682 = vmatprep.subr.mxu0 0.0
  %683 = vmatpush1.msra.mxu0 0.0
  %684 = vmatprep.subr.mxu0 0.0
  %685 = vmatpush1.msra.mxu0 0.0
  %686 = vmatprep.subr.mxu0 0.0
  %687 = vmatpush1.msra.mxu0 0.0
  %688 = vmatprep.subr.mxu0 0.0
  %689 = vmatpush1.msra.mxu0 0.0
  %690 = vmatprep.subr.mxu0 0.0
  %691 = vmatpush1.msra.mxu0 0.0
  %692 = vmatprep.subr.mxu0 0.0
  %693 = vmatpush1.msra.mxu0 0.0
  %694 = vmatprep.subr.mxu0 0.0
  %695 = vmatpush1.msra.mxu0 0.0
  %696 = vmatprep.subr.mxu0 0.0
  %697 = vmatpush1.msra.mxu0 0.0
  %698 = vmatprep.subr.mxu0 0.0
  %699 = vmatpush1.msra.mxu0 0.0
  %700 = vmatprep.subr.mxu0 0.0
  %701 = vmatpush1.msra.mxu0 0.0
  %702 = vmatprep.subr.mxu0 0.0
  %703 = vmatpush1.msra.mxu0 0.0
  %704 = vmatprep.mubr.f32.mxu0 0.0
  %705 = vmatmul.mubr.f32.gmra.mrb[0].mxu0 %v638
  %v706 = vpop.f32.mrb[0].mxu0
  %v707 = vadd.f32 %v632, %v706
  %v708 = vpop.f32.mrb[0].mxu0
  %709 = vdwg.mxu0
  %v710 = vld [vmem:[%s7] sm:$0x1]
  %v712 = vlaneseq
  %v713 = vshrl.u32 %v712, 7
  %v714 = vsub.s32 0, %v713
  %v715 = vrot.slane %v710, %v714
  %v717 = vadd.f32 %v707, %v715
  %v718 = vld [vmem:[%s8] sm:$0xff]
  %v719 = vld [vmem:[%s8 + $0x8] sm:$0xff]
  %v720 = vld [vmem:[%s8 + $0x10] sm:$0xff]
  %v721 = vld [vmem:[%s8 + $0x18] sm:$0xff]
  %v722 = vld [vmem:[#allocation2] sm:$0x1]
  %v724 = vlaneseq
  %v725 = vshrl.u32 %v724, 7
  %v726 = vsub.s32 0, %v725
  %v727 = vrot.slane %v722, %v726
  %v730 = vsel %vm62, %v717, 0
  %732 = vmatprep.subr.mxu0 0.0
  %733 = vmatpush1.msra.mxu0 %v718
  %734 = vmatprep.subr.mxu0 0.0
  %735 = vmatpush1.msra.mxu0 %v719
  %736 = vmatprep.subr.mxu0 0.0
  %737 = vmatpush1.msra.mxu0 %v720
  %738 = vmatprep.subr.mxu0 0.0
  %739 = vmatpush1.msra.mxu0 %v721
  %740 = vmatprep.subr.mxu0 0.0
  %741 = vmatpush1.msra.mxu0 0.0
  %742 = vmatprep.subr.mxu0 0.0
  %743 = vmatpush1.msra.mxu0 0.0
  %744 = vmatprep.subr.mxu0 0.0
  %745 = vmatpush1.msra.mxu0 0.0
  %746 = vmatprep.subr.mxu0 0.0
  %747 = vmatpush1.msra.mxu0 0.0
  %748 = vmatprep.subr.mxu0 0.0
  %749 = vmatpush1.msra.mxu0 0.0
  %750 = vmatprep.subr.mxu0 0.0
  %751 = vmatpush1.msra.mxu0 0.0
  %752 = vmatprep.subr.mxu0 0.0
  %753 = vmatpush1.msra.mxu0 0.0
  %754 = vmatprep.subr.mxu0 0.0
  %755 = vmatpush1.msra.mxu0 0.0
  %756 = vmatprep.subr.mxu0 0.0
  %757 = vmatpush1.msra.mxu0 0.0
  %758 = vmatprep.subr.mxu0 0.0
  %759 = vmatpush1.msra.mxu0 0.0
  %760 = vmatprep.subr.mxu0 0.0
  %761 = vmatpush1.msra.mxu0 0.0
  %762 = vmatprep.subr.mxu0 0.0
  %763 = vmatpush1.msra.mxu0 0.0
  %764 = vmatprep.subr.mxu0 0.0
  %765 = vmatpush1.msra.mxu0 0.0
  %766 = vmatprep.subr.mxu0 0.0
  %767 = vmatpush1.msra.mxu0 0.0
  %768 = vmatprep.subr.mxu0 0.0
  %769 = vmatpush1.msra.mxu0 0.0
  %770 = vmatprep.subr.mxu0 0.0
  %771 = vmatpush1.msra.mxu0 0.0
  %772 = vmatprep.subr.mxu0 0.0
  %773 = vmatpush1.msra.mxu0 0.0
  %774 = vmatprep.subr.mxu0 0.0
  %775 = vmatpush1.msra.mxu0 0.0
  %776 = vmatprep.subr.mxu0 0.0
  %777 = vmatpush1.msra.mxu0 0.0
  %778 = vmatprep.subr.mxu0 0.0
  %779 = vmatpush1.msra.mxu0 0.0
  %780 = vmatprep.subr.mxu0 0.0
  %781 = vmatpush1.msra.mxu0 0.0
  %782 = vmatprep.subr.mxu0 0.0
  %783 = vmatpush1.msra.mxu0 0.0
  %784 = vmatprep.subr.mxu0 0.0
  %785 = vmatpush1.msra.mxu0 0.0
  %786 = vmatprep.subr.mxu0 0.0
  %787 = vmatpush1.msra.mxu0 0.0
  %788 = vmatprep.subr.mxu0 0.0
  %789 = vmatpush1.msra.mxu0 0.0
  %790 = vmatprep.subr.mxu0 0.0
  %791 = vmatpush1.msra.mxu0 0.0
  %792 = vmatprep.subr.mxu0 0.0
  %793 = vmatpush1.msra.mxu0 0.0
  %794 = vmatprep.subr.mxu0 0.0
  %795 = vmatpush1.msra.mxu0 0.0
  %796 = vmatprep.mubr.f32.mxu0 0.0
  %797 = vmatmul.mubr.f32.gmra.mrb[0].mxu0 %v730
  %v798 = vpop.f32.mrb[0].mxu0
  %v799 = vadd.f32 %v727, %v798
  %v800 = vpop.f32.mrb[0].mxu0
  %801 = vdwg.mxu0
  %vm802 = vcmask 7168
  %803 = vst.msk [vmem:[%s10] sm:$0xff] %vm802, %v799
  // Predicated region
  $region42: #{tpu_custom_call.1} parent=0 // pred_check
    _
  $region43: #{tpu_custom_call.1} parent=0 // pred_check_branch
    %805 = sbr.rel (0) target = $region45
  $region44: #{tpu_custom_call.1} parent=0 // pred_region
    _
  $region45: #{tpu_custom_call.1} parent=0 // pred_fallthru
    _
  // Predicated region
  $region46: #{tpu_custom_call.1} parent=0 // pred_check
    _
  $region47: #{tpu_custom_call.1} parent=0 // pred_check_branch
    %807 = sbr.rel (0) target = $region49
  $region48: #{tpu_custom_call.1} parent=0 // pred_region
    _
  $region49: #{tpu_custom_call.1} parent=0 // pred_fallthru
    _

</llo_original>
